<compile_context>
chip_gen: v5e
topology: v5e:2x2
jax: 0.10.0
libtpu: 0.0.40
codegen_flags: <defaults>
</compile_context>

<pallas_src>
import functools

import jax
import jax.numpy as jnp
from jax.experimental import pallas as pl
from jax.experimental.pallas import tpu as pltpu

NEG_BIAS = -1e30  # finite "minus infinity" for padded action logits


def _round_up(x, m):
    return (x + m - 1) // m * m


def _tiling(B):
    """Batch tile / grid selection: minimal padding, >=2 steps for v7x megacore."""
    TB_MAX = 2048
    steps = pl.cdiv(B, TB_MAX)
    if B >= 16:
        steps = max(steps, 2)            # v7x: give both TensorCores work
    TB = _round_up(pl.cdiv(B, steps), 8)
    steps = pl.cdiv(B, TB)
    return TB, steps, TB * steps


def _forward_body(x, w1, b1, aw2, ab2, aw3, ab3, cw2, cb2, cw3, cb3):
    """Shared actor+critic compute for one batch tile.
    Returns (logp [TB, a_pad] f32, value [TB, 1] f32)."""
    # fused layer 1 (actor 256 cols + critic 128 cols share the LHS)
    h1 = jnp.tanh(jnp.dot(x, w1, preferred_element_type=jnp.float32) + b1)      # [TB, 384]
    ha = h1[:, :256].astype(jnp.bfloat16)
    hc = h1[:, 256:].astype(jnp.bfloat16)

    # actor layers 2-3 + log-softmax (action dim padded to a_pad lanes)
    h2 = jnp.tanh(jnp.dot(ha, aw2, preferred_element_type=jnp.float32) + ab2)
    logits = jnp.dot(h2.astype(jnp.bfloat16), aw3,
                     preferred_element_type=jnp.float32) + ab3                  # [TB, a_pad]
    m = jnp.max(logits, axis=-1, keepdims=True)
    z = logits - m
    lse = jnp.log(jnp.sum(jnp.exp(z), axis=-1, keepdims=True))
    logp = z - lse

    # critic layers 2-3 (head padded to 128 output lanes; only column 0 is real)
    c2 = jnp.tanh(jnp.dot(hc, cw2, preferred_element_type=jnp.float32) + cb2)
    cval = jnp.dot(c2.astype(jnp.bfloat16), cw3,
                   preferred_element_type=jnp.float32) + cb3                    # [TB, 128]
    value = jnp.sum(cval, axis=-1, keepdims=True)  # padded cols are exact zero
    return logp, value


def _act_kernel(action_dim,
                x_ref, w1_ref, b1_ref, aw2_ref, ab2_ref, aw3_ref, ab3_ref,
                cw2_ref, cb2_ref, cw3_ref, cb3_ref, out_ref):
    logp, value = _forward_body(
        x_ref[...], w1_ref[...], b1_ref[...],
        aw2_ref[...], ab2_ref[...], aw3_ref[...], ab3_ref[...],
        cw2_ref[...], cb2_ref[...], cw3_ref[...], cb3_ref[...])
    # Pack the critic value into the (padding) lane `action_dim` of the logp block
    # -> single lane-dense f32 output, no second store stream.
    col = jax.lax.broadcasted_iota(jnp.int32, logp.shape, 1)
    out_ref[...] = jnp.where(col == action_dim, value, logp)


def _eval_kernel(action_dim,
                 x_ref, act_ref, w1_ref, b1_ref, aw2_ref, ab2_ref, aw3_ref, ab3_ref,
                 cw2_ref, cb2_ref, cw3_ref, cb3_ref, out_ref):
    logp, value = _forward_body(
        x_ref[...], w1_ref[...], b1_ref[...],
        aw2_ref[...], ab2_ref[...], aw3_ref[...], ab3_ref[...],
        cw2_ref[...], cb2_ref[...], cw3_ref[...], cb3_ref[...])

    col = jax.lax.broadcasted_iota(jnp.int32, logp.shape, 1)
    valid = col < action_dim                                   # mask padded action lanes
    chosen_mask = (col == act_ref[...]) & valid                # act_ref: [TB,1] int32
    chosen = jnp.sum(jnp.where(chosen_mask, logp, 0.0), axis=-1, keepdims=True)
    p = jnp.exp(logp)
    ent = -jnp.sum(jnp.where(valid, p * logp, 0.0), axis=-1, keepdims=True)

    # Packed [TB,128] output: col0=chosen_logp, col1=value, col2=entropy.
    pcol = jax.lax.broadcasted_iota(jnp.int32, out_ref.shape, 1)
    out_ref[...] = jnp.where(pcol == 0, chosen,
                    jnp.where(pcol == 1, value,
                     jnp.where(pcol == 2, ent, 0.0)))


def _weight_tuple(params):
    return (params["w1"], params["b1"],
            params["aw2"], params["ab2"], params["aw3"], params["ab3"],
            params["cw2"], params["cb2"], params["cw3"], params["cb3"])


def _cost(B_pad, S, a_pad, weight_bytes, out_cols, extra_in_bytes=0):
    flops = 2 * B_pad * (S * 384 + 256 * 256 + 256 * a_pad + 128 * 128 + 128 * 128)
    transcendentals = B_pad * (768 + a_pad + 1)          # tanh + exp + log
    bytes_accessed = B_pad * (S * 2 + extra_in_bytes) + weight_bytes + B_pad * out_cols * 4
    return pl.CostEstimate(flops=int(flops), transcendentals=int(transcendentals),
                           bytes_accessed=int(bytes_accessed))


def actor_critic_forward(state, params, action_dim):
    """Fused forward.  Returns (log_probs [B, A] f32, state_value [B] f32)."""
    B, S = state.shape
    a_pad = params["aw3"].shape[1]
    TB, steps, B_pad = _tiling(B)

    x = state.astype(jnp.bfloat16)
    if B_pad != B:
        x = jnp.pad(x, ((0, B_pad - B), (0, 0)))

    weights = _weight_tuple(params)
    weight_bytes = sum(int(w.size) * w.dtype.itemsize for w in weights)

    batch_spec = lambda cols: pl.BlockSpec((TB, cols), lambda i: (i, 0))
    resident = lambda w: pl.BlockSpec(w.shape, lambda i: (0, 0))   # DMA once, VMEM-resident

    out = pl.pallas_call(
        functools.partial(_act_kernel, action_dim),
        out_shape=jax.ShapeDtypeStruct((B_pad, a_pad), jnp.float32),
        grid=(steps,),
        in_specs=[batch_spec(S)] + [resident(w) for w in weights],
        out_specs=batch_spec(a_pad),
        compiler_params=pltpu.CompilerParams(
            dimension_semantics=("parallel",),
            vmem_limit_bytes=32 * 1024 * 1024),
        cost_estimate=_cost(B_pad, S, a_pad, weight_bytes, a_pad),
    )(x, *weights)

    logp = out[:B, :action_dim]
    value = out[:B, action_dim]
    return logp, value


def evaluate(state, action, params, action_dim):
    """Mirror of ActorCritic.evaluate(state, action).
    Gather of the chosen log-prob, entropy and value are computed in-kernel;
    only a packed [TB,128] block is written back."""
    B, S = state.shape
    a_pad = params["aw3"].shape[1]
    TB, steps, B_pad = _tiling(B)

    x = state.astype(jnp.bfloat16)
    act_col = action.astype(jnp.int32).reshape(B, 1)
    if B_pad != B:
        x = jnp.pad(x, ((0, B_pad - B), (0, 0)))
        act_col = jnp.pad(act_col, ((0, B_pad - B), (0, 0)))

    weights = _weight_tuple(params)
    weight_bytes = sum(int(w.size) * w.dtype.itemsize for w in weights)

    batch_spec = lambda cols: pl.BlockSpec((TB, cols), lambda i: (i, 0))
    resident = lambda w: pl.BlockSpec(w.shape, lambda i: (0, 0))

    out = pl.pallas_call(
        functools.partial(_eval_kernel, action_dim),
        out_shape=jax.ShapeDtypeStruct((B_pad, 128), jnp.float32),
        grid=(steps,),
        in_specs=[batch_spec(S), batch_spec(1)] + [resident(w) for w in weights],
        out_specs=batch_spec(128),
        compiler_params=pltpu.CompilerParams(
            dimension_semantics=("parallel",),
            vmem_limit_bytes=32 * 1024 * 1024),
        cost_estimate=_cost(B_pad, S, a_pad, weight_bytes, 128, extra_in_bytes=4),
    )(x, act_col, *weights)

    action_logprobs = out[:B, 0]
    state_value = out[:B, 1]
    dist_entropy = out[:B, 2]
    return action_logprobs, state_value, dist_entropy


def act(state, params, action_dim, key):
    """Mirror of ActorCritic.act(state); categorical sampling stays in plain JAX."""
    logp, _ = actor_critic_forward(state, params, action_dim)
    action = jax.random.categorical(key, logp, axis=-1)
    action_logprob = jnp.take_along_axis(logp, action[:, None], axis=-1)[:, 0]
    return action, action_logprob


def init_params(key, state_dim, action_dim):
    """PyTorch-Linear-style U(-1/sqrt(fan_in), 1/sqrt(fan_in)) init, packed:
       fused layer-1 weight, bf16 matmul weights, f32 biases, padded heads.
       Action head padded to round_up(action_dim + 1, 128) so there is always a
       spare padding lane for the critic value in the act-path output."""
    def uniform(k, shape, fan_in):
        bound = 1.0 / (fan_in ** 0.5)
        return jax.random.uniform(k, shape, jnp.float32, -bound, bound)

    keys = jax.random.split(key, 12)
    aw1 = uniform(keys[0], (state_dim, 256), state_dim)
    ab1 = uniform(keys[1], (1, 256), state_dim)
    aw2 = uniform(keys[2], (256, 256), 256)
    ab2 = uniform(keys[3], (1, 256), 256)
    aw3 = uniform(keys[4], (256, action_dim), 256)
    ab3 = uniform(keys[5], (1, action_dim), 256)
    cw1 = uniform(keys[6], (state_dim, 128), state_dim)
    cb1 = uniform(keys[7], (1, 128), state_dim)
    cw2 = uniform(keys[8], (128, 128), 128)
    cb2 = uniform(keys[9], (1, 128), 128)
    cw3 = uniform(keys[10], (128, 1), 128)
    cb3 = uniform(keys[11], (1, 1), 128)

    a_pad = _round_up(action_dim + 1, 128)
    aw3_p = jnp.zeros((256, a_pad), jnp.float32).at[:, :action_dim].set(aw3)
    ab3_p = jnp.full((1, a_pad), NEG_BIAS, jnp.float32).at[:, :action_dim].set(ab3)
    cw3_p = jnp.zeros((128, 128), jnp.float32).at[:, :1].set(cw3)
    cb3_p = jnp.zeros((1, 128), jnp.float32).at[:, :1].set(cb3)

    return {
        "w1": jnp.concatenate([aw1, cw1], axis=1).astype(jnp.bfloat16),  # [S, 384]
        "b1": jnp.concatenate([ab1, cb1], axis=1),                        # [1, 384] f32
        "aw2": aw2.astype(jnp.bfloat16), "ab2": ab2,
        "aw3": aw3_p.astype(jnp.bfloat16), "ab3": ab3_p,
        "cw2": cw2.astype(jnp.bfloat16), "cb2": cb2,
        "cw3": cw3_p.astype(jnp.bfloat16), "cb3": cb3_p,
    }


if __name__ == "__main__":
    STATE_DIM = 32
    ACTION_DIM = 8
    BATCH = 8

    root = jax.random.PRNGKey(0)
    k_params, k_state, k_action, k_sample = jax.random.split(root, 4)

    params = init_params(k_params, STATE_DIM, ACTION_DIM)
    state = jax.random.normal(k_state, (BATCH, STATE_DIM), jnp.float32)
    action = jax.random.randint(k_action, (BATCH,), 0, ACTION_DIM)

    # evaluate(state, action) -- in-kernel gather/entropy/value path
    action_logprobs, state_value, dist_entropy = evaluate(state, action, params, ACTION_DIM)
    jax.block_until_ready((action_logprobs, state_value, dist_entropy))

    # act(state) -- full-logp path (value packed into a padding lane)
    sampled_action, sampled_logprob = act(state, params, ACTION_DIM, k_sample)
    jax.block_until_ready((sampled_action, sampled_logprob))

    # forward path outputs
    logp_full, value_full = actor_critic_forward(state, params, ACTION_DIM)
    jax.block_until_ready((logp_full, value_full))

    # Pure-JAX reference mirroring the kernel's bf16-matmul / f32-accumulate path.
    def ref_forward(x, p, a):
        xb = x.astype(jnp.bfloat16)
        h1 = jnp.tanh(jnp.dot(xb, p["w1"], preferred_element_type=jnp.float32) + p["b1"])
        ha = h1[:, :256].astype(jnp.bfloat16)
        hc = h1[:, 256:].astype(jnp.bfloat16)
        h2 = jnp.tanh(jnp.dot(ha, p["aw2"], preferred_element_type=jnp.float32) + p["ab2"])
        logits = jnp.dot(h2.astype(jnp.bfloat16), p["aw3"],
                         preferred_element_type=jnp.float32) + p["ab3"]
        logp = jax.nn.log_softmax(logits, axis=-1)[:, :a]
        c2 = jnp.tanh(jnp.dot(hc, p["cw2"], preferred_element_type=jnp.float32) + p["cb2"])
        v = (jnp.dot(c2.astype(jnp.bfloat16), p["cw3"],
                     preferred_element_type=jnp.float32) + p["cb3"])[:, 0]
        return logp, v

    ref_logp, ref_v = ref_forward(state, params, ACTION_DIM)
    ref_alp = jnp.take_along_axis(ref_logp, action[:, None].astype(jnp.int32), axis=-1)[:, 0]
    ref_ent = -jnp.sum(jnp.exp(ref_logp) * ref_logp, axis=-1)
    ref_sampled_lp = jnp.take_along_axis(ref_logp, sampled_action[:, None], axis=-1)[:, 0]

    assert jnp.allclose(action_logprobs, ref_alp, atol=1e-2, rtol=1e-2)
    assert jnp.allclose(state_value, ref_v, atol=1e-2, rtol=1e-2)
    assert jnp.allclose(dist_entropy, ref_ent, atol=1e-2, rtol=1e-2)
    assert jnp.allclose(logp_full, ref_logp, atol=1e-2, rtol=1e-2)
    assert jnp.allclose(value_full, ref_v, atol=1e-2, rtol=1e-2)
    assert jnp.allclose(sampled_logprob, ref_sampled_lp, atol=1e-2, rtol=1e-2)

    print("KERNEL_OK")
</pallas_src>

<mosaic_0001>
module attributes {stable_mosaic.version = 11 : i64} {
  func.func @_eval_kernel(%arg0: i32, %arg1: memref<8x32xbf16, #tpu.memory_space<vmem>>, %arg2: memref<8x1xi32, #tpu.memory_space<vmem>>, %arg3: memref<32x384xbf16, #tpu.memory_space<vmem>>, %arg4: memref<1x384xf32, #tpu.memory_space<vmem>>, %arg5: memref<256x256xbf16, #tpu.memory_space<vmem>>, %arg6: memref<1x256xf32, #tpu.memory_space<vmem>>, %arg7: memref<256x128xbf16, #tpu.memory_space<vmem>>, %arg8: memref<1x128xf32, #tpu.memory_space<vmem>>, %arg9: memref<128x128xbf16, #tpu.memory_space<vmem>>, %arg10: memref<1x128xf32, #tpu.memory_space<vmem>>, %arg11: memref<128x128xbf16, #tpu.memory_space<vmem>>, %arg12: memref<1x128xf32, #tpu.memory_space<vmem>>, %arg13: memref<8x128xf32, #tpu.memory_space<vmem>>) attributes {dimension_semantics = [#tpu.dimension_semantics<parallel>], iteration_bounds = array<i64: 1>, scalar_prefetch = 0 : i64, scratch_operands = 0 : i64, tpu.core_type = #tpu.core_type<tc>, window_params = [{transform_indices = @transform_0, window_bounds = array<i64: 8, 32>}, {transform_indices = @transform_1, window_bounds = array<i64: 8, 1>}, {pipeline_mode = #tpu.pipeline_mode<synchronous>, transform_indices = @transform_2, window_bounds = array<i64: 32, 384>}, {pipeline_mode = #tpu.pipeline_mode<synchronous>, transform_indices = @transform_3, window_bounds = array<i64: 1, 384>}, {pipeline_mode = #tpu.pipeline_mode<synchronous>, transform_indices = @transform_4, window_bounds = array<i64: 256, 256>}, {pipeline_mode = #tpu.pipeline_mode<synchronous>, transform_indices = @transform_5, window_bounds = array<i64: 1, 256>}, {pipeline_mode = #tpu.pipeline_mode<synchronous>, transform_indices = @transform_6, window_bounds = array<i64: 256, 128>}, {pipeline_mode = #tpu.pipeline_mode<synchronous>, transform_indices = @transform_7, window_bounds = array<i64: 1, 128>}, {pipeline_mode = #tpu.pipeline_mode<synchronous>, transform_indices = @transform_8, window_bounds = array<i64: 128, 128>}, {pipeline_mode = #tpu.pipeline_mode<synchronous>, transform_indices = @transform_9, window_bounds = array<i64: 1, 128>}, {pipeline_mode = #tpu.pipeline_mode<synchronous>, transform_indices = @transform_10, window_bounds = array<i64: 128, 128>}, {pipeline_mode = #tpu.pipeline_mode<synchronous>, transform_indices = @transform_11, window_bounds = array<i64: 1, 128>}, {transform_indices = @transform_12, window_bounds = array<i64: 8, 128>}]} {
    %c0 = arith.constant 0 : index
    %c0_0 = arith.constant 0 : index
    %0 = vector.load %arg1[%c0, %c0_0] : memref<8x32xbf16, #tpu.memory_space<vmem>>, vector<8x32xbf16>
    %c0_1 = arith.constant 0 : index
    %c0_2 = arith.constant 0 : index
    %1 = vector.load %arg3[%c0_1, %c0_2] : memref<32x384xbf16, #tpu.memory_space<vmem>>, vector<32x384xbf16>
    %c0_3 = arith.constant 0 : index
    %c0_4 = arith.constant 0 : index
    %2 = vector.load %arg4[%c0_3, %c0_4] : memref<1x384xf32, #tpu.memory_space<vmem>>, vector<1x384xf32>
    %c0_5 = arith.constant 0 : index
    %c0_6 = arith.constant 0 : index
    %3 = vector.load %arg5[%c0_5, %c0_6] : memref<256x256xbf16, #tpu.memory_space<vmem>>, vector<256x256xbf16>
    %c0_7 = arith.constant 0 : index
    %c0_8 = arith.constant 0 : index
    %4 = vector.load %arg6[%c0_7, %c0_8] : memref<1x256xf32, #tpu.memory_space<vmem>>, vector<1x256xf32>
    %c0_9 = arith.constant 0 : index
    %c0_10 = arith.constant 0 : index
    %5 = vector.load %arg7[%c0_9, %c0_10] : memref<256x128xbf16, #tpu.memory_space<vmem>>, vector<256x128xbf16>
    %c0_11 = arith.constant 0 : index
    %c0_12 = arith.constant 0 : index
    %6 = vector.load %arg8[%c0_11, %c0_12] : memref<1x128xf32, #tpu.memory_space<vmem>>, vector<1x128xf32>
    %c0_13 = arith.constant 0 : index
    %c0_14 = arith.constant 0 : index
    %7 = vector.load %arg9[%c0_13, %c0_14] : memref<128x128xbf16, #tpu.memory_space<vmem>>, vector<128x128xbf16>
    %c0_15 = arith.constant 0 : index
    %c0_16 = arith.constant 0 : index
    %8 = vector.load %arg10[%c0_15, %c0_16] : memref<1x128xf32, #tpu.memory_space<vmem>>, vector<1x128xf32>
    %c0_17 = arith.constant 0 : index
    %c0_18 = arith.constant 0 : index
    %9 = vector.load %arg11[%c0_17, %c0_18] : memref<128x128xbf16, #tpu.memory_space<vmem>>, vector<128x128xbf16>
    %c0_19 = arith.constant 0 : index
    %c0_20 = arith.constant 0 : index
    %10 = vector.load %arg12[%c0_19, %c0_20] : memref<1x128xf32, #tpu.memory_space<vmem>>, vector<1x128xf32>
    %cst = arith.constant dense<0.000000e+00> : vector<8x384xf32>
    %11 = tpu.matmul %0, %1, %cst {dimension_numbers = #tpu.dot_dimension_numbers<[1], [0], [0], [1], [0, 0, 1, 1], [], []>} : vector<8x32xbf16>, vector<32x384xbf16>, vector<8x384xf32> -> vector<8x384xf32>
    %12 = vector.broadcast %2 : vector<1x384xf32> to vector<8x384xf32>
    %13 = arith.addf %11, %12 : vector<8x384xf32>
    %14 = math.tanh %13 : vector<8x384xf32>
    %15 = vector.extract_strided_slice %14 {offsets = [0, 0], sizes = [8, 256], strides = [1, 1]} : vector<8x384xf32> to vector<8x256xf32>
    %16 = arith.truncf %15 : vector<8x256xf32> to vector<8x256xbf16>
    %17 = vector.extract_strided_slice %14 {offsets = [0, 256], sizes = [8, 128], strides = [1, 1]} : vector<8x384xf32> to vector<8x128xf32>
    %18 = arith.truncf %17 : vector<8x128xf32> to vector<8x128xbf16>
    %cst_21 = arith.constant dense<0.000000e+00> : vector<8x256xf32>
    %19 = tpu.matmul %16, %3, %cst_21 {dimension_numbers = #tpu.dot_dimension_numbers<[1], [0], [0], [1], [0, 0, 1, 1], [], []>} : vector<8x256xbf16>, vector<256x256xbf16>, vector<8x256xf32> -> vector<8x256xf32>
    %20 = vector.broadcast %4 : vector<1x256xf32> to vector<8x256xf32>
    %21 = arith.addf %19, %20 : vector<8x256xf32>
    %22 = math.tanh %21 : vector<8x256xf32>
    %23 = arith.truncf %22 : vector<8x256xf32> to vector<8x256xbf16>
    %cst_22 = arith.constant dense<0.000000e+00> : vector<8x128xf32>
    %24 = tpu.matmul %23, %5, %cst_22 {dimension_numbers = #tpu.dot_dimension_numbers<[1], [0], [0], [1], [0, 0, 1, 1], [], []>} : vector<8x256xbf16>, vector<256x128xbf16>, vector<8x128xf32> -> vector<8x128xf32>
    %25 = vector.broadcast %6 : vector<1x128xf32> to vector<8x128xf32>
    %26 = arith.addf %24, %25 : vector<8x128xf32>
    %cst_23 = arith.constant dense<0xFF800000> : vector<8xf32>
    %27 = vector.multi_reduction <maximumf>, %26, %cst_23 [1] : vector<8x128xf32> to vector<8xf32>
    %28 = vector.shape_cast %27 : vector<8xf32> to vector<8x1xf32>
    %29 = vector.broadcast %28 : vector<8x1xf32> to vector<8x128xf32>
    %30 = arith.subf %26, %29 : vector<8x128xf32>
    %31 = math.exp %30 : vector<8x128xf32>
    %cst_24 = arith.constant dense<0.000000e+00> : vector<8xf32>
    %32 = vector.multi_reduction <add>, %31, %cst_24 [1] : vector<8x128xf32> to vector<8xf32>
    %33 = vector.shape_cast %32 : vector<8xf32> to vector<8x1xf32>
    %34 = math.log %33 : vector<8x1xf32>
    %35 = vector.broadcast %34 : vector<8x1xf32> to vector<8x128xf32>
    %36 = arith.subf %30, %35 : vector<8x128xf32>
    %cst_25 = arith.constant dense<0.000000e+00> : vector<8x128xf32>
    %37 = tpu.matmul %18, %7, %cst_25 {dimension_numbers = #tpu.dot_dimension_numbers<[1], [0], [0], [1], [0, 0, 1, 1], [], []>} : vector<8x128xbf16>, vector<128x128xbf16>, vector<8x128xf32> -> vector<8x128xf32>
    %38 = vector.broadcast %8 : vector<1x128xf32> to vector<8x128xf32>
    %39 = arith.addf %37, %38 : vector<8x128xf32>
    %40 = math.tanh %39 : vector<8x128xf32>
    %41 = arith.truncf %40 : vector<8x128xf32> to vector<8x128xbf16>
    %cst_26 = arith.constant dense<0.000000e+00> : vector<8x128xf32>
    %42 = tpu.matmul %41, %9, %cst_26 {dimension_numbers = #tpu.dot_dimension_numbers<[1], [0], [0], [1], [0, 0, 1, 1], [], []>} : vector<8x128xbf16>, vector<128x128xbf16>, vector<8x128xf32> -> vector<8x128xf32>
    %43 = vector.broadcast %10 : vector<1x128xf32> to vector<8x128xf32>
    %44 = arith.addf %42, %43 : vector<8x128xf32>
    %cst_27 = arith.constant dense<0.000000e+00> : vector<8xf32>
    %45 = vector.multi_reduction <add>, %44, %cst_27 [1] : vector<8x128xf32> to vector<8xf32>
    %46 = vector.shape_cast %45 : vector<8xf32> to vector<8x1xf32>
    %47 = tpu.iota {dimensions = array<i32: 1>} : vector<8x128xi32>
    %c8_i32 = arith.constant 8 : i32
    %48 = vector.broadcast %c8_i32 : i32 to vector<8x128xi32>
    %49 = arith.cmpi slt, %47, %48 : vector<8x128xi32>
    %c0_28 = arith.constant 0 : index
    %c0_29 = arith.constant 0 : index
    %50 = vector.load %arg2[%c0_28, %c0_29] : memref<8x1xi32, #tpu.memory_space<vmem>>, vector<8x1xi32>
    %51 = vector.broadcast %50 : vector<8x1xi32> to vector<8x128xi32>
    %52 = arith.cmpi eq, %47, %51 : vector<8x128xi32>
    %53 = arith.andi %52, %49 : vector<8x128xi1>
    %cst_30 = arith.constant 0.000000e+00 : f32
    %54 = vector.broadcast %cst_30 : f32 to vector<8x128xf32>
    %55 = arith.select %53, %36, %54 : vector<8x128xi1>, vector<8x128xf32>
    %cst_31 = arith.constant dense<0.000000e+00> : vector<8xf32>
    %56 = vector.multi_reduction <add>, %55, %cst_31 [1] : vector<8x128xf32> to vector<8xf32>
    %57 = vector.shape_cast %56 : vector<8xf32> to vector<8x1xf32>
    %58 = math.exp %36 : vector<8x128xf32>
    %59 = arith.mulf %58, %36 : vector<8x128xf32>
    %cst_32 = arith.constant 0.000000e+00 : f32
    %60 = vector.broadcast %cst_32 : f32 to vector<8x128xf32>
    %61 = arith.select %49, %59, %60 : vector<8x128xi1>, vector<8x128xf32>
    %cst_33 = arith.constant dense<0.000000e+00> : vector<8xf32>
    %62 = vector.multi_reduction <add>, %61, %cst_33 [1] : vector<8x128xf32> to vector<8xf32>
    %63 = vector.shape_cast %62 : vector<8xf32> to vector<8x1xf32>
    %cst_34 = arith.constant 0.000000e+00 : f32
    %64 = vector.broadcast %cst_34 : f32 to vector<8x1xf32>
    %65 = arith.subf %64, %63 : vector<8x1xf32>
    %66 = tpu.iota {dimensions = array<i32: 1>} : vector<8x128xi32>
    %c0_i32 = arith.constant 0 : i32
    %67 = vector.broadcast %c0_i32 : i32 to vector<8x128xi32>
    %68 = arith.cmpi eq, %66, %67 : vector<8x128xi32>
    %c1_i32 = arith.constant 1 : i32
    %69 = vector.broadcast %c1_i32 : i32 to vector<8x128xi32>
    %70 = arith.cmpi eq, %66, %69 : vector<8x128xi32>
    %c2_i32 = arith.constant 2 : i32
    %71 = vector.broadcast %c2_i32 : i32 to vector<8x128xi32>
    %72 = arith.cmpi eq, %66, %71 : vector<8x128xi32>
    %cst_35 = arith.constant 0.000000e+00 : f32
    %73 = vector.shape_cast %65 : vector<8x1xf32> to vector<8x1xf32>
    %74 = vector.broadcast %73 : vector<8x1xf32> to vector<8x128xf32>
    %75 = vector.broadcast %cst_35 : f32 to vector<8x128xf32>
    %76 = arith.select %72, %74, %75 : vector<8x128xi1>, vector<8x128xf32>
    %77 = vector.shape_cast %46 : vector<8x1xf32> to vector<8x1xf32>
    %78 = vector.broadcast %77 : vector<8x1xf32> to vector<8x128xf32>
    %79 = arith.select %70, %78, %76 : vector<8x128xi1>, vector<8x128xf32>
    %80 = vector.shape_cast %57 : vector<8x1xf32> to vector<8x1xf32>
    %81 = vector.broadcast %80 : vector<8x1xf32> to vector<8x128xf32>
    %82 = arith.select %68, %81, %79 : vector<8x128xi1>, vector<8x128xf32>
    %c0_36 = arith.constant 0 : index
    %c0_37 = arith.constant 0 : index
    %83 = vector.load %arg13[%c0_36, %c0_37] : memref<8x128xf32, #tpu.memory_space<vmem>>, vector<8x128xf32>
    tpu.vector_store %arg13[%c0_36, %c0_37], %82 {strides = array<i32>} : memref<8x128xf32, #tpu.memory_space<vmem>>, vector<8x128xf32>,
    return
  }
  func.func @transform_0(%arg0: i32) -> (i32, i32) {
    %c0_i32 = arith.constant 0 : i32
    %c0_i32_0 = arith.constant 0 : i32
    return %arg0, %c0_i32 : i32, i32
  }
  func.func @transform_1(%arg0: i32) -> (i32, i32) {
    %c0_i32 = arith.constant 0 : i32
    %c0_i32_0 = arith.constant 0 : i32
    return %arg0, %c0_i32 : i32, i32
  }
  func.func @transform_2(%arg0: i32) -> (i32, i32) {
    %c0_i32 = arith.constant 0 : i32
    %c0_i32_0 = arith.constant 0 : i32
    %c0_i32_1 = arith.constant 0 : i32
    return %c0_i32, %c0_i32_0 : i32, i32
  }
  func.func @transform_3(%arg0: i32) -> (i32, i32) {
    %c0_i32 = arith.constant 0 : i32
    %c0_i32_0 = arith.constant 0 : i32
    %c0_i32_1 = arith.constant 0 : i32
    return %c0_i32, %c0_i32_0 : i32, i32
  }
  func.func @transform_4(%arg0: i32) -> (i32, i32) {
    %c0_i32 = arith.constant 0 : i32
    %c0_i32_0 = arith.constant 0 : i32
    %c0_i32_1 = arith.constant 0 : i32
    return %c0_i32, %c0_i32_0 : i32, i32
  }
  func.func @transform_5(%arg0: i32) -> (i32, i32) {
    %c0_i32 = arith.constant 0 : i32
    %c0_i32_0 = arith.constant 0 : i32
    %c0_i32_1 = arith.constant 0 : i32
    return %c0_i32, %c0_i32_0 : i32, i32
  }
  func.func @transform_6(%arg0: i32) -> (i32, i32) {
    %c0_i32 = arith.constant 0 : i32
    %c0_i32_0 = arith.constant 0 : i32
    %c0_i32_1 = arith.constant 0 : i32
    return %c0_i32, %c0_i32_0 : i32, i32
  }
  func.func @transform_7(%arg0: i32) -> (i32, i32) {
    %c0_i32 = arith.constant 0 : i32
    %c0_i32_0 = arith.constant 0 : i32
    %c0_i32_1 = arith.constant 0 : i32
    return %c0_i32, %c0_i32_0 : i32, i32
  }
  func.func @transform_8(%arg0: i32) -> (i32, i32) {
    %c0_i32 = arith.constant 0 : i32
    %c0_i32_0 = arith.constant 0 : i32
    %c0_i32_1 = arith.constant 0 : i32
    return %c0_i32, %c0_i32_0 : i32, i32
  }
  func.func @transform_9(%arg0: i32) -> (i32, i32) {
    %c0_i32 = arith.constant 0 : i32
    %c0_i32_0 = arith.constant 0 : i32
    %c0_i32_1 = arith.constant 0 : i32
    return %c0_i32, %c0_i32_0 : i32, i32
  }
  func.func @transform_10(%arg0: i32) -> (i32, i32) {
    %c0_i32 = arith.constant 0 : i32
    %c0_i32_0 = arith.constant 0 : i32
    %c0_i32_1 = arith.constant 0 : i32
    return %c0_i32, %c0_i32_0 : i32, i32
  }
  func.func @transform_11(%arg0: i32) -> (i32, i32) {
    %c0_i32 = arith.constant 0 : i32
    %c0_i32_0 = arith.constant 0 : i32
    %c0_i32_1 = arith.constant 0 : i32
    return %c0_i32, %c0_i32_0 : i32, i32
  }
  func.func @transform_12(%arg0: i32) -> (i32, i32) {
    %c0_i32 = arith.constant 0 : i32
    %c0_i32_0 = arith.constant 0 : i32
    return %arg0, %c0_i32 : i32, i32
  }
}

</mosaic_0001>

<llo_original>
// kernel: tpu_custom_call.1
$region0: #{tpu_custom_call.1}
  #allocation0 [shape = 'u32[]', space=smem, size = 0x4, offset = 0x4, fixed_abs, tag = 'smem constant byte address 0x4 - core index']
  #allocation1 [shape = 'u32[72,128]{1,0:T(1,128)}', space=vmem, size = 0x9000, scoped, tag = 'internal scratch']
  %s0 = inlined_call_operand.vmem [shape: bf16[8,32], index: 0, kind: input, shape index: {}]
  %s1 = inlined_call_operand.vmem [shape: s32[8,1], index: 1, kind: input, shape index: {}]
  %s2 = inlined_call_operand.hbm [shape: bf16[32,384], index: 2, kind: input, shape index: {}]
  %s3 = inlined_call_operand.vmem [shape: f32[1,384], index: 3, kind: input, shape index: {}]
  %s4 = inlined_call_operand.hbm [shape: bf16[256,256], index: 4, kind: input, shape index: {}]
  %s5 = inlined_call_operand.vmem [shape: f32[1,256], index: 5, kind: input, shape index: {}]
  %s6 = inlined_call_operand.hbm [shape: bf16[256,128], index: 6, kind: input, shape index: {}]
  %s7 = inlined_call_operand.vmem [shape: f32[1,128], index: 7, kind: input, shape index: {}]
  %s8 = inlined_call_operand.hbm [shape: bf16[128,128], index: 8, kind: input, shape index: {}]
  %s9 = inlined_call_operand.vmem [shape: f32[1,128], index: 9, kind: input, shape index: {}]
  %s10 = inlined_call_operand.hbm [shape: bf16[128,128], index: 10, kind: input, shape index: {}]
  %s11 = inlined_call_operand.vmem [shape: f32[1,128], index: 11, kind: input, shape index: {}]
  %s12 = inlined_call_operand.hbm [shape: f32[8,128], index: 12, kind: output, shape index: {}]
  %s13 = sld [smem:[#allocation0]]
  $region78: #{tpu_custom_call.1} parent=0
    _
  %s15 = ssub.s32 1, %s13
  %s16 = scalar_select 0, %s15, %s13
  $region1: #{tpu_custom_call.1} parent=0
    #allocation2 [shape = 'u8[24576]{0}', space=vmem, size = 0x6000, scoped, tag = 'input window, operand 2, single buffered']
    #allocation3 [shape = 's32[1]{0}', space=sflag, size = 0x4, scoped, tag = 'scoped memory for tpu_custom_call.1']
    #allocation4 [shape = 's32[1]{0}', space=sflag, size = 0x4, scoped, tag = 'scoped memory for tpu_custom_call.1']
    #allocation5 [shape = 'u8[131072]{0}', space=vmem, size = 0x20000, scoped, tag = 'input window, operand 4, single buffered']
    #allocation6 [shape = 's32[1]{0}', space=sflag, size = 0x4, scoped, tag = 'scoped memory for tpu_custom_call.1']
    #allocation7 [shape = 'u8[65536]{0}', space=vmem, size = 0x10000, scoped, tag = 'input window, operand 6, single buffered']
    #allocation8 [shape = 'u8[32768]{0}', space=vmem, size = 0x8000, scoped, tag = 'input window, operand 8, single buffered']
    #allocation9 [shape = 's32[1]{0}', space=sflag, size = 0x4, scoped, tag = 'scoped memory for tpu_custom_call.1']
    #allocation10 [shape = 'u8[32768]{0}', space=vmem, size = 0x8000, scoped, tag = 'input window, operand 10, single buffered']
    #allocation11 [shape = 'u8[4096]{0}', space=vmem, size = 0x1000, scoped, tag = 'output window, operand 0, single buffered']
    %17 = vsyncpa [#allocation3], 0
    %18 = vsyncpa [#allocation6], 0
    %19 = vsyncpa [#allocation9], 0
    %20 = vsyncpa [#allocation4], 0
    // Predicated region
    $region2: #{tpu_custom_call.1} parent=1 // pred_check
      _
    $region3: #{tpu_custom_call.1} parent=1 // pred_check_branch
      %22 = sbr.rel (0) target = $region5
    $region4: #{tpu_custom_call.1} parent=1 // pred_region
      _
    $region5: #{tpu_custom_call.1} parent=1 // pred_fallthru
      _
    // Predicated region
    $region6: #{tpu_custom_call.1} parent=1 // pred_check
      _
    $region7: #{tpu_custom_call.1} parent=1 // pred_check_branch
      %24 = sbr.rel (0) target = $region9
    $region8: #{tpu_custom_call.1} parent=1 // pred_region
      _
    $region9: #{tpu_custom_call.1} parent=1 // pred_fallthru
      _
    // Predicated region
    $region10: #{tpu_custom_call.1} parent=1 // pred_check
      _
    $region11: #{tpu_custom_call.1} parent=1 // pred_check_branch
      %26 = sbr.rel (0) target = $region13
    $region12: #{tpu_custom_call.1} parent=1 // pred_region
      %28 = vsyncadd [#allocation3], 0
      %s29 = sshll.u32 %s2, 4
      %s30 = int_to_ptr.hbm [resolvable:$true] %s29
      %s31 = sshll.u32 [#allocation2], 4
      %s32 = int_to_ptr.vmem [resolvable:$true] %s31
      %37 = dma.hbm_to_vmem [thread:$0]  %s30, 768, %s32, [#allocation3], 192, 192, 12
    $region13: #{tpu_custom_call.1} parent=1 // pred_fallthru
      _
    // Predicated region
    $region14: #{tpu_custom_call.1} parent=1 // pred_check
      _
    $region15: #{tpu_custom_call.1} parent=1 // pred_check_branch
      %39 = sbr.rel (0) target = $region17
    $region16: #{tpu_custom_call.1} parent=1 // pred_region
      _
    $region17: #{tpu_custom_call.1} parent=1 // pred_fallthru
      _
    // Predicated region
    $region18: #{tpu_custom_call.1} parent=1 // pred_check
      _
    $region19: #{tpu_custom_call.1} parent=1 // pred_check_branch
      %41 = sbr.rel (0) target = $region21
    $region20: #{tpu_custom_call.1} parent=1 // pred_region
      %43 = vsyncadd [#allocation6], 0
      %s44 = sshll.u32 %s4, 4
      %s45 = int_to_ptr.hbm [resolvable:$true] %s44
      %s46 = sshll.u32 [#allocation5], 4
      %s47 = int_to_ptr.vmem [resolvable:$true] %s46
      %52 = dma.hbm_to_vmem [thread:$0]  %s45, 4096, %s47, [#allocation6], 128, 128, 8
    $region21: #{tpu_custom_call.1} parent=1 // pred_fallthru
      _
    // Predicated region
    $region22: #{tpu_custom_call.1} parent=1 // pred_check
      _
    $region23: #{tpu_custom_call.1} parent=1 // pred_check_branch
      %54 = sbr.rel (0) target = $region25
    $region24: #{tpu_custom_call.1} parent=1 // pred_region
      _
    $region25: #{tpu_custom_call.1} parent=1 // pred_fallthru
      _
    // Predicated region
    $region26: #{tpu_custom_call.1} parent=1 // pred_check
      _
    $region27: #{tpu_custom_call.1} parent=1 // pred_check_branch
      %56 = sbr.rel (0) target = $region29
    $region28: #{tpu_custom_call.1} parent=1 // pred_region
      %58 = vsyncadd [#allocation6], 0
      %s59 = sshll.u32 %s6, 4
      %s60 = int_to_ptr.hbm [resolvable:$true] %s59
      %s61 = sshll.u32 [#allocation7], 4
      %s62 = int_to_ptr.vmem [resolvable:$true] %s61
      %67 = dma.hbm_to_vmem [thread:$0]  %s60, 2048, %s62, [#allocation6], 64, 64, 4
    $region29: #{tpu_custom_call.1} parent=1 // pred_fallthru
      _
    // Predicated region
    $region30: #{tpu_custom_call.1} parent=1 // pred_check
      _
    $region31: #{tpu_custom_call.1} parent=1 // pred_check_branch
      %69 = sbr.rel (0) target = $region33
    $region32: #{tpu_custom_call.1} parent=1 // pred_region
      _
    $region33: #{tpu_custom_call.1} parent=1 // pred_fallthru
      _
    // Predicated region
    $region34: #{tpu_custom_call.1} parent=1 // pred_check
      _
    $region35: #{tpu_custom_call.1} parent=1 // pred_check_branch
      %71 = sbr.rel (0) target = $region37
    $region36: #{tpu_custom_call.1} parent=1 // pred_region
      %73 = vsyncadd [#allocation9], 0
      %s74 = sshll.u32 %s8, 4
      %s75 = int_to_ptr.hbm [resolvable:$true] %s74
      %s76 = sshll.u32 [#allocation8], 4
      %s77 = int_to_ptr.vmem [resolvable:$true] %s76
      %82 = dma.hbm_to_vmem [thread:$0]  %s75, 1024, %s77, [#allocation9], 64, 64, 4
    $region37: #{tpu_custom_call.1} parent=1 // pred_fallthru
      _
    // Predicated region
    $region38: #{tpu_custom_call.1} parent=1 // pred_check
      _
    $region39: #{tpu_custom_call.1} parent=1 // pred_check_branch
      %84 = sbr.rel (0) target = $region41
    $region40: #{tpu_custom_call.1} parent=1 // pred_region
      _
    $region41: #{tpu_custom_call.1} parent=1 // pred_fallthru
      _
    // Predicated region
    $region42: #{tpu_custom_call.1} parent=1 // pred_check
      _
    $region43: #{tpu_custom_call.1} parent=1 // pred_check_branch
      %86 = sbr.rel (0) target = $region45
    $region44: #{tpu_custom_call.1} parent=1 // pred_region
      %88 = vsyncadd [#allocation9], 0
      %s89 = sshll.u32 %s10, 4
      %s90 = int_to_ptr.hbm [resolvable:$true] %s89
      %s91 = sshll.u32 [#allocation10], 4
      %s92 = int_to_ptr.vmem [resolvable:$true] %s91
      %97 = dma.hbm_to_vmem [thread:$0]  %s90, 1024, %s92, [#allocation9], 64, 64, 4
    $region45: #{tpu_custom_call.1} parent=1 // pred_fallthru
      _
    // Predicated region
    $region46: #{tpu_custom_call.1} parent=1 // pred_check
      _
    $region47: #{tpu_custom_call.1} parent=1 // pred_check_branch
      %99 = sbr.rel (0) target = $region49
    $region48: #{tpu_custom_call.1} parent=1 // pred_region
      _
    $region49: #{tpu_custom_call.1} parent=1 // pred_fallthru
      _
    // Predicated region
    $region50: #{tpu_custom_call.1} parent=1 // pred_check
      _
    $region51: #{tpu_custom_call.1} parent=1 // pred_check_branch
      %101 = sbr.rel (0) target = $region53
    $region52: #{tpu_custom_call.1} parent=1 // pred_region
      %103 = dma.done [#allocation3], 768
    $region53: #{tpu_custom_call.1} parent=1 // pred_fallthru
      _
    // Predicated region
    $region54: #{tpu_custom_call.1} parent=1 // pred_check
      _
    $region55: #{tpu_custom_call.1} parent=1 // pred_check_branch
      %105 = sbr.rel (0) target = $region57
    $region56: #{tpu_custom_call.1} parent=1 // pred_region
      %107 = dma.done [#allocation6], 4096
    $region57: #{tpu_custom_call.1} parent=1 // pred_fallthru
      _
    // Predicated region
    $region58: #{tpu_custom_call.1} parent=1 // pred_check
      _
    $region59: #{tpu_custom_call.1} parent=1 // pred_check_branch
      %109 = sbr.rel (0) target = $region61
    $region60: #{tpu_custom_call.1} parent=1 // pred_region
      %111 = dma.done [#allocation6], 2048
    $region61: #{tpu_custom_call.1} parent=1 // pred_fallthru
      _
    // Predicated region
    $region62: #{tpu_custom_call.1} parent=1 // pred_check
      _
    $region63: #{tpu_custom_call.1} parent=1 // pred_check_branch
      %113 = sbr.rel (0) target = $region65
    $region64: #{tpu_custom_call.1} parent=1 // pred_region
      %115 = dma.done [#allocation9], 1024
    $region65: #{tpu_custom_call.1} parent=1 // pred_fallthru
      _
    // Predicated region
    $region66: #{tpu_custom_call.1} parent=1 // pred_check
      _
    $region67: #{tpu_custom_call.1} parent=1 // pred_check_branch
      %117 = sbr.rel (0) target = $region69
    $region68: #{tpu_custom_call.1} parent=1 // pred_region
      %119 = dma.done [#allocation9], 1024
    $region69: #{tpu_custom_call.1} parent=1 // pred_fallthru
      _
    %v121 = vld [vmem:[%s0] sm:$0xf]
    %v122 = vld [vmem:[#allocation2] sm:$0xff]
    %v123 = vld [vmem:[#allocation2 + $0x8] sm:$0xf]
    %v124 = vld [vmem:[#allocation2 + $0xc] sm:$0xff]
    %v125 = vld [vmem:[#allocation2 + $0x14] sm:$0xf]
    %v126 = vld [vmem:[#allocation2 + $0x18] sm:$0xff]
    %v127 = vld [vmem:[#allocation2 + $0x20] sm:$0xf]
    %v128 = vld [vmem:[#allocation2 + $0x24] sm:$0xff]
    %v129 = vld [vmem:[#allocation2 + $0x2c] sm:$0xf]
    %v130 = vld [vmem:[%s3] sm:$0x7]
    %v131 = vld [vmem:[#allocation5] sm:$0xff]
    %v132 = vld [vmem:[#allocation5 + $0x8] sm:$0xff]
    %v133 = vld [vmem:[#allocation5 + $0x10] sm:$0xff]
    %v134 = vld [vmem:[#allocation5 + $0x18] sm:$0xff]
    %v135 = vld [vmem:[#allocation5 + $0x20] sm:$0xff]
    %v136 = vld [vmem:[#allocation5 + $0x28] sm:$0xff]
    %v137 = vld [vmem:[#allocation5 + $0x30] sm:$0xff]
    %v138 = vld [vmem:[#allocation5 + $0x38] sm:$0xff]
    %v139 = vld [vmem:[#allocation5 + $0x40] sm:$0xff]
    %v140 = vld [vmem:[#allocation5 + $0x48] sm:$0xff]
    %v141 = vld [vmem:[#allocation5 + $0x50] sm:$0xff]
    %v142 = vld [vmem:[#allocation5 + $0x58] sm:$0xff]
    %v143 = vld [vmem:[#allocation5 + $0x60] sm:$0xff]
    %v144 = vld [vmem:[#allocation5 + $0x68] sm:$0xff]
    %v145 = vld [vmem:[#allocation5 + $0x70] sm:$0xff]
    %v146 = vld [vmem:[#allocation5 + $0x78] sm:$0xff]
    %v147 = vld [vmem:[#allocation5 + $0x80] sm:$0xff]
    %v148 = vld [vmem:[#allocation5 + $0x88] sm:$0xff]
    %v149 = vld [vmem:[#allocation5 + $0x90] sm:$0xff]
    %v150 = vld [vmem:[#allocation5 + $0x98] sm:$0xff]
    %v151 = vld [vmem:[#allocation5 + $0xa0] sm:$0xff]
    %v152 = vld [vmem:[#allocation5 + $0xa8] sm:$0xff]
    %v153 = vld [vmem:[#allocation5 + $0xb0] sm:$0xff]
    %v154 = vld [vmem:[#allocation5 + $0xb8] sm:$0xff]
    %v155 = vld [vmem:[#allocation5 + $0xc0] sm:$0xff]
    %v156 = vld [vmem:[#allocation5 + $0xc8] sm:$0xff]
    %v157 = vld [vmem:[#allocation5 + $0xd0] sm:$0xff]
    %v158 = vld [vmem:[#allocation5 + $0xd8] sm:$0xff]
    %v159 = vld [vmem:[#allocation5 + $0xe0] sm:$0xff]
    %v160 = vld [vmem:[#allocation5 + $0xe8] sm:$0xff]
    %v161 = vld [vmem:[#allocation5 + $0xf0] sm:$0xff]
    %v162 = vld [vmem:[#allocation5 + $0xf8] sm:$0xff]
    %v163 = vld [vmem:[%s5] sm:$0x3]
    %v164 = vld [vmem:[#allocation7] sm:$0xf]
    %v165 = vld [vmem:[#allocation7 + $0x4] sm:$0xf]
    %v166 = vld [vmem:[#allocation7 + $0x8] sm:$0xf]
    %v167 = vld [vmem:[#allocation7 + $0xc] sm:$0xf]
    %v168 = vld [vmem:[#allocation7 + $0x10] sm:$0xf]
    %v169 = vld [vmem:[#allocation7 + $0x14] sm:$0xf]
    %v170 = vld [vmem:[#allocation7 + $0x18] sm:$0xf]
    %v171 = vld [vmem:[#allocation7 + $0x1c] sm:$0xf]
    %v172 = vld [vmem:[#allocation7 + $0x20] sm:$0xf]
    %v173 = vld [vmem:[#allocation7 + $0x24] sm:$0xf]
    %v174 = vld [vmem:[#allocation7 + $0x28] sm:$0xf]
    %v175 = vld [vmem:[#allocation7 + $0x2c] sm:$0xf]
    %v176 = vld [vmem:[#allocation7 + $0x30] sm:$0xf]
    %v177 = vld [vmem:[#allocation7 + $0x34] sm:$0xf]
    %v178 = vld [vmem:[#allocation7 + $0x38] sm:$0xf]
    %v179 = vld [vmem:[#allocation7 + $0x3c] sm:$0xf]
    %v180 = vld [vmem:[#allocation7 + $0x40] sm:$0xf]
    %v181 = vld [vmem:[#allocation7 + $0x44] sm:$0xf]
    %v182 = vld [vmem:[#allocation7 + $0x48] sm:$0xf]
    %v183 = vld [vmem:[#allocation7 + $0x4c] sm:$0xf]
    %v184 = vld [vmem:[#allocation7 + $0x50] sm:$0xf]
    %v185 = vld [vmem:[#allocation7 + $0x54] sm:$0xf]
    %v186 = vld [vmem:[#allocation7 + $0x58] sm:$0xf]
    %v187 = vld [vmem:[#allocation7 + $0x5c] sm:$0xf]
    %v188 = vld [vmem:[#allocation7 + $0x60] sm:$0xf]
    %v189 = vld [vmem:[#allocation7 + $0x64] sm:$0xf]
    %v190 = vld [vmem:[#allocation7 + $0x68] sm:$0xf]
    %v191 = vld [vmem:[#allocation7 + $0x6c] sm:$0xf]
    %v192 = vld [vmem:[#allocation7 + $0x70] sm:$0xf]
    %v193 = vld [vmem:[#allocation7 + $0x74] sm:$0xf]
    %v194 = vld [vmem:[#allocation7 + $0x78] sm:$0xf]
    %v195 = vld [vmem:[#allocation7 + $0x7c] sm:$0xf]
    %v196 = vld [vmem:[%s7] sm:$0x1]
    %v197 = vld [vmem:[#allocation8] sm:$0xf]
    %v198 = vld [vmem:[#allocation8 + $0x4] sm:$0xf]
    %v199 = vld [vmem:[#allocation8 + $0x8] sm:$0xf]
    %v200 = vld [vmem:[#allocation8 + $0xc] sm:$0xf]
    %v201 = vld [vmem:[#allocation8 + $0x10] sm:$0xf]
    %v202 = vld [vmem:[#allocation8 + $0x14] sm:$0xf]
    %v203 = vld [vmem:[#allocation8 + $0x18] sm:$0xf]
    %v204 = vld [vmem:[#allocation8 + $0x1c] sm:$0xf]
    %v205 = vld [vmem:[#allocation8 + $0x20] sm:$0xf]
    %v206 = vld [vmem:[#allocation8 + $0x24] sm:$0xf]
    %v207 = vld [vmem:[#allocation8 + $0x28] sm:$0xf]
    %v208 = vld [vmem:[#allocation8 + $0x2c] sm:$0xf]
    %v209 = vld [vmem:[#allocation8 + $0x30] sm:$0xf]
    %v210 = vld [vmem:[#allocation8 + $0x34] sm:$0xf]
    %v211 = vld [vmem:[#allocation8 + $0x38] sm:$0xf]
    %v212 = vld [vmem:[#allocation8 + $0x3c] sm:$0xf]
    %v213 = vld [vmem:[%s9] sm:$0x1]
    %v214 = vld [vmem:[#allocation10] sm:$0xf]
    %v215 = vld [vmem:[#allocation10 + $0x4] sm:$0xf]
    %v216 = vld [vmem:[#allocation10 + $0x8] sm:$0xf]
    %v217 = vld [vmem:[#allocation10 + $0xc] sm:$0xf]
    %v218 = vld [vmem:[#allocation10 + $0x10] sm:$0xf]
    %v219 = vld [vmem:[#allocation10 + $0x14] sm:$0xf]
    %v220 = vld [vmem:[#allocation10 + $0x18] sm:$0xf]
    %v221 = vld [vmem:[#allocation10 + $0x1c] sm:$0xf]
    %v222 = vld [vmem:[#allocation10 + $0x20] sm:$0xf]
    %v223 = vld [vmem:[#allocation10 + $0x24] sm:$0xf]
    %v224 = vld [vmem:[#allocation10 + $0x28] sm:$0xf]
    %v225 = vld [vmem:[#allocation10 + $0x2c] sm:$0xf]
    %v226 = vld [vmem:[#allocation10 + $0x30] sm:$0xf]
    %v227 = vld [vmem:[#allocation10 + $0x34] sm:$0xf]
    %v228 = vld [vmem:[#allocation10 + $0x38] sm:$0xf]
    %v229 = vld [vmem:[#allocation10 + $0x3c] sm:$0xf]
    %v230 = vld [vmem:[%s11] sm:$0x1]
    %v232 = vperm.slane %v130, 0
    %v233 = vperm.slane %v130, 1
    %v234 = vperm.slane %v130, 2
    %v246 = vunpack.c.l.b16 %v122
    %v247 = vunpack.c.h.b16 %v122
    %v248 = vunpack.c.l.b16 %v123
    %v249 = vunpack.c.l.b16 %v124
    %v250 = vunpack.c.h.b16 %v124
    %v251 = vunpack.c.l.b16 %v125
    %v252 = vunpack.c.l.b16 %v126
    %v253 = vunpack.c.h.b16 %v126
    %v254 = vunpack.c.l.b16 %v127
    %v255 = vunpack.c.l.b16 %v128
    %v256 = vunpack.c.h.b16 %v128
    %v257 = vunpack.c.l.b16 %v129
    %v258 = vpack.c.b16 %v249, %v246
    %v259 = vpack.c.b16 %v250, %v247
    %v260 = vpack.c.b16 %v251, %v248
    %v261 = vpack.c.b16 %v255, %v252
    %v262 = vpack.c.b16 %v256, %v253
    %v263 = vpack.c.b16 %v257, %v254
    %vm270 = vcmask 261120
    %v272 = vsel %vm270, %v121, 0
    %274 = vmatpush.bf16.msra.mxu0 0
    %275 = vmatpush.bf16.msra.mxu0 0
    %276 = vmatpush.bf16.msra.mxu0 0
    %277 = vmatpush.bf16.msra.mxu0 0
    %278 = vmatpush.bf16.msra.mxu0 0
    %279 = vmatpush.bf16.msra.mxu0 0
    %280 = vmatpush.bf16.msra.mxu0 %v261
    %281 = vmatpush.bf16.msra.mxu0 %v258
    %282 = vmatmul.bf16.gmra.mxu0 %v272
    %v283 = vpop.f32.mrf.mxu0
    %v284 = vadd.f32 %v232, %v283
    %v285 = vpop.f32.mrf.mxu0
    %286 = vdwg.mxu0
    %287 = vmatpush.bf16.msra.mxu0 0
    %288 = vmatpush.bf16.msra.mxu0 0
    %289 = vmatpush.bf16.msra.mxu0 0
    %290 = vmatpush.bf16.msra.mxu0 0
    %291 = vmatpush.bf16.msra.mxu0 0
    %292 = vmatpush.bf16.msra.mxu0 0
    %293 = vmatpush.bf16.msra.mxu0 %v262
    %294 = vmatpush.bf16.msra.mxu0 %v259
    %295 = vmatmul.bf16.gmra.mxu0 %v272
    %v296 = vpop.f32.mrf.mxu0
    %v297 = vadd.f32 %v233, %v296
    %v298 = vpop.f32.mrf.mxu0
    %299 = vdwg.mxu0
    %300 = vmatpush.bf16.msra.mxu0 0
    %301 = vmatpush.bf16.msra.mxu0 0
    %302 = vmatpush.bf16.msra.mxu0 0
    %303 = vmatpush.bf16.msra.mxu0 0
    %304 = vmatpush.bf16.msra.mxu0 0
    %305 = vmatpush.bf16.msra.mxu0 0
    %306 = vmatpush.bf16.msra.mxu0 %v263
    %307 = vmatpush.bf16.msra.mxu0 %v260
    %308 = vmatmul.bf16.gmra.mxu0 %v272
    %v309 = vpop.f32.mrf.mxu0
    %v310 = vadd.f32 %v234, %v309
    %v311 = vpop.f32.mrf.mxu0
    %312 = vdwg.mxu0
    %v313 = vtanh.pop %v284
    %v314 = vtanh.pop %v297
    %v315 = vtanh.pop %v310
    %v316 = vpack.c.bf16 %v313, %v313
    %v317 = vpack.c.bf16 %v314, %v314
    %v318 = vpack.c.bf16 %v315, %v315
    %v320 = vperm.slane %v163, 0
    %v321 = vperm.slane %v163, 1
    %v356 = vunpack.c.l.b16 %v131
    %v357 = vunpack.c.h.b16 %v131
    %v358 = vunpack.c.l.b16 %v132
    %v359 = vunpack.c.h.b16 %v132
    %v360 = vunpack.c.l.b16 %v133
    %v361 = vunpack.c.h.b16 %v133
    %v362 = vunpack.c.l.b16 %v134
    %v363 = vunpack.c.h.b16 %v134
    %v364 = vunpack.c.l.b16 %v135
    %v365 = vunpack.c.h.b16 %v135
    %v366 = vunpack.c.l.b16 %v136
    %v367 = vunpack.c.h.b16 %v136
    %v368 = vunpack.c.l.b16 %v137
    %v369 = vunpack.c.h.b16 %v137
    %v370 = vunpack.c.l.b16 %v138
    %v371 = vunpack.c.h.b16 %v138
    %v372 = vunpack.c.l.b16 %v139
    %v373 = vunpack.c.h.b16 %v139
    %v374 = vunpack.c.l.b16 %v140
    %v375 = vunpack.c.h.b16 %v140
    %v376 = vunpack.c.l.b16 %v141
    %v377 = vunpack.c.h.b16 %v141
    %v378 = vunpack.c.l.b16 %v142
    %v379 = vunpack.c.h.b16 %v142
    %v380 = vunpack.c.l.b16 %v143
    %v381 = vunpack.c.h.b16 %v143
    %v382 = vunpack.c.l.b16 %v144
    %v383 = vunpack.c.h.b16 %v144
    %v384 = vunpack.c.l.b16 %v145
    %v385 = vunpack.c.h.b16 %v145
    %v386 = vunpack.c.l.b16 %v146
    %v387 = vunpack.c.h.b16 %v146
    %v388 = vunpack.c.l.b16 %v147
    %v389 = vunpack.c.h.b16 %v147
    %v390 = vunpack.c.l.b16 %v148
    %v391 = vunpack.c.h.b16 %v148
    %v392 = vunpack.c.l.b16 %v149
    %v393 = vunpack.c.h.b16 %v149
    %v394 = vunpack.c.l.b16 %v150
    %v395 = vunpack.c.h.b16 %v150
    %v396 = vunpack.c.l.b16 %v151
    %v397 = vunpack.c.h.b16 %v151
    %v398 = vunpack.c.l.b16 %v152
    %v399 = vunpack.c.h.b16 %v152
    %v400 = vunpack.c.l.b16 %v153
    %v401 = vunpack.c.h.b16 %v153
    %v402 = vunpack.c.l.b16 %v154
    %v403 = vunpack.c.h.b16 %v154
    %v404 = vunpack.c.l.b16 %v155
    %v405 = vunpack.c.h.b16 %v155
    %v406 = vunpack.c.l.b16 %v156
    %v407 = vunpack.c.h.b16 %v156
    %v408 = vunpack.c.l.b16 %v157
    %v409 = vunpack.c.h.b16 %v157
    %v410 = vunpack.c.l.b16 %v158
    %v411 = vunpack.c.h.b16 %v158
    %v412 = vunpack.c.l.b16 %v159
    %v413 = vunpack.c.h.b16 %v159
    %v414 = vunpack.c.l.b16 %v160
    %v415 = vunpack.c.h.b16 %v160
    %v416 = vunpack.c.l.b16 %v161
    %v417 = vunpack.c.h.b16 %v161
    %v418 = vunpack.c.l.b16 %v162
    %v419 = vunpack.c.h.b16 %v162
    %v420 = vpack.c.b16 %v358, %v356
    %v421 = vpack.c.b16 %v359, %v357
    %v422 = vpack.c.b16 %v362, %v360
    %v423 = vpack.c.b16 %v363, %v361
    %v424 = vpack.c.b16 %v366, %v364
    %v425 = vpack.c.b16 %v367, %v365
    %v426 = vpack.c.b16 %v370, %v368
    %v427 = vpack.c.b16 %v371, %v369
    %v428 = vpack.c.b16 %v374, %v372
    %v429 = vpack.c.b16 %v375, %v373
    %v430 = vpack.c.b16 %v378, %v376
    %v431 = vpack.c.b16 %v379, %v377
    %v432 = vpack.c.b16 %v382, %v380
    %v433 = vpack.c.b16 %v383, %v381
    %v434 = vpack.c.b16 %v386, %v384
    %v435 = vpack.c.b16 %v387, %v385
    %v436 = vpack.c.b16 %v390, %v388
    %v437 = vpack.c.b16 %v391, %v389
    %v438 = vpack.c.b16 %v394, %v392
    %v439 = vpack.c.b16 %v395, %v393
    %v440 = vpack.c.b16 %v398, %v396
    %v441 = vpack.c.b16 %v399, %v397
    %v442 = vpack.c.b16 %v402, %v400
    %v443 = vpack.c.b16 %v403, %v401
    %v444 = vpack.c.b16 %v406, %v404
    %v445 = vpack.c.b16 %v407, %v405
    %v446 = vpack.c.b16 %v410, %v408
    %v447 = vpack.c.b16 %v411, %v409
    %v448 = vpack.c.b16 %v414, %v412
    %v449 = vpack.c.b16 %v415, %v413
    %v450 = vpack.c.b16 %v418, %v416
    %v451 = vpack.c.b16 %v419, %v417
    %484 = vmatpush.bf16.msra.mxu0 %v434
    %485 = vmatpush.bf16.msra.mxu0 %v432
    %486 = vmatpush.bf16.msra.mxu0 %v430
    %487 = vmatpush.bf16.msra.mxu0 %v428
    %488 = vmatpush.bf16.msra.mxu0 %v426
    %489 = vmatpush.bf16.msra.mxu0 %v424
    %490 = vmatpush.bf16.msra.mxu0 %v422
    %491 = vmatpush.bf16.msra.mxu0 %v420
    %492 = vmatmul.bf16.gmra.mxu0 %v316
    %v493 = vpop.f32.mrf.mxu0
    %v494 = vadd.f32 %v320, %v493
    %v495 = vpop.f32.mrf.mxu0
    %496 = vdwg.mxu0
    %497 = vmatpush.bf16.msra.mxu0 %v450
    %498 = vmatpush.bf16.msra.mxu0 %v448
    %499 = vmatpush.bf16.msra.mxu0 %v446
    %500 = vmatpush.bf16.msra.mxu0 %v444
    %501 = vmatpush.bf16.msra.mxu0 %v442
    %502 = vmatpush.bf16.msra.mxu0 %v440
    %503 = vmatpush.bf16.msra.mxu0 %v438
    %504 = vmatpush.bf16.msra.mxu0 %v436
    %505 = vmatmul.bf16.gmra.mxu0 %v317
    %v506 = vpop.f32.mrf.mxu0
    %v507 = vadd.f32 %v494, %v506
    %v508 = vpop.f32.mrf.mxu0
    %509 = vdwg.mxu0
    %510 = vmatpush.bf16.msra.mxu0 %v435
    %511 = vmatpush.bf16.msra.mxu0 %v433
    %512 = vmatpush.bf16.msra.mxu0 %v431
    %513 = vmatpush.bf16.msra.mxu0 %v429
    %514 = vmatpush.bf16.msra.mxu0 %v427
    %515 = vmatpush.bf16.msra.mxu0 %v425
    %516 = vmatpush.bf16.msra.mxu0 %v423
    %517 = vmatpush.bf16.msra.mxu0 %v421
    %518 = vmatmul.bf16.gmra.mxu0 %v316
    %v519 = vpop.f32.mrf.mxu0
    %v520 = vadd.f32 %v321, %v519
    %v521 = vpop.f32.mrf.mxu0
    %522 = vdwg.mxu0
    %523 = vmatpush.bf16.msra.mxu0 %v451
    %524 = vmatpush.bf16.msra.mxu0 %v449
    %525 = vmatpush.bf16.msra.mxu0 %v447
    %526 = vmatpush.bf16.msra.mxu0 %v445
    %527 = vmatpush.bf16.msra.mxu0 %v443
    %528 = vmatpush.bf16.msra.mxu0 %v441
    %529 = vmatpush.bf16.msra.mxu0 %v439
    %530 = vmatpush.bf16.msra.mxu0 %v437
    %531 = vmatmul.bf16.gmra.mxu0 %v317
    %v532 = vpop.f32.mrf.mxu0
    %v533 = vadd.f32 %v520, %v532
    %v534 = vpop.f32.mrf.mxu0
    %535 = vdwg.mxu0
    %v536 = vtanh.pop %v507
    %v537 = vtanh.pop %v533
    %v538 = vpack.c.bf16 %v536, %v536
    %v539 = vpack.c.bf16 %v537, %v537
    %v541 = vperm.slane %v196, 0
    %v575 = vunpack.c.l.b16 %v164
    %v576 = vunpack.c.l.b16 %v165
    %v577 = vunpack.c.l.b16 %v166
    %v578 = vunpack.c.l.b16 %v167
    %v579 = vunpack.c.l.b16 %v168
    %v580 = vunpack.c.l.b16 %v169
    %v581 = vunpack.c.l.b16 %v170
    %v582 = vunpack.c.l.b16 %v171
    %v583 = vunpack.c.l.b16 %v172
    %v584 = vunpack.c.l.b16 %v173
    %v585 = vunpack.c.l.b16 %v174
    %v586 = vunpack.c.l.b16 %v175
    %v587 = vunpack.c.l.b16 %v176
    %v588 = vunpack.c.l.b16 %v177
    %v589 = vunpack.c.l.b16 %v178
    %v590 = vunpack.c.l.b16 %v179
    %v591 = vunpack.c.l.b16 %v180
    %v592 = vunpack.c.l.b16 %v181
    %v593 = vunpack.c.l.b16 %v182
    %v594 = vunpack.c.l.b16 %v183
    %v595 = vunpack.c.l.b16 %v184
    %v596 = vunpack.c.l.b16 %v185
    %v597 = vunpack.c.l.b16 %v186
    %v598 = vunpack.c.l.b16 %v187
    %v599 = vunpack.c.l.b16 %v188
    %v600 = vunpack.c.l.b16 %v189
    %v601 = vunpack.c.l.b16 %v190
    %v602 = vunpack.c.l.b16 %v191
    %v603 = vunpack.c.l.b16 %v192
    %v604 = vunpack.c.l.b16 %v193
    %v605 = vunpack.c.l.b16 %v194
    %v606 = vunpack.c.l.b16 %v195
    %v607 = vpack.c.b16 %v576, %v575
    %v608 = vpack.c.b16 %v578, %v577
    %v609 = vpack.c.b16 %v580, %v579
    %v610 = vpack.c.b16 %v582, %v581
    %v611 = vpack.c.b16 %v584, %v583
    %v612 = vpack.c.b16 %v586, %v585
    %v613 = vpack.c.b16 %v588, %v587
    %v614 = vpack.c.b16 %v590, %v589
    %v615 = vpack.c.b16 %v592, %v591
    %v616 = vpack.c.b16 %v594, %v593
    %v617 = vpack.c.b16 %v596, %v595
    %v618 = vpack.c.b16 %v598, %v597
    %v619 = vpack.c.b16 %v600, %v599
    %v620 = vpack.c.b16 %v602, %v601
    %v621 = vpack.c.b16 %v604, %v603
    %v622 = vpack.c.b16 %v606, %v605
    %639 = vmatpush.bf16.msra.mxu0 %v614
    %640 = vmatpush.bf16.msra.mxu0 %v613
    %641 = vmatpush.bf16.msra.mxu0 %v612
    %642 = vmatpush.bf16.msra.mxu0 %v611
    %643 = vmatpush.bf16.msra.mxu0 %v610
    %644 = vmatpush.bf16.msra.mxu0 %v609
    %645 = vmatpush.bf16.msra.mxu0 %v608
    %646 = vmatpush.bf16.msra.mxu0 %v607
    %647 = vmatmul.bf16.gmra.mxu0 %v538
    %v648 = vpop.f32.mrf.mxu0
    %v649 = vadd.f32 %v541, %v648
    %v650 = vpop.f32.mrf.mxu0
    %651 = vdwg.mxu0
    %652 = vmatpush.bf16.msra.mxu0 %v622
    %653 = vmatpush.bf16.msra.mxu0 %v621
    %654 = vmatpush.bf16.msra.mxu0 %v620
    %655 = vmatpush.bf16.msra.mxu0 %v619
    %656 = vmatpush.bf16.msra.mxu0 %v618
    %657 = vmatpush.bf16.msra.mxu0 %v617
    %658 = vmatpush.bf16.msra.mxu0 %v616
    %659 = vmatpush.bf16.msra.mxu0 %v615
    %660 = vmatmul.bf16.gmra.mxu0 %v539
    %v661 = vpop.f32.mrf.mxu0
    %v662 = vadd.f32 %v649, %v661
    %v663 = vpop.f32.mrf.mxu0
    %664 = vdwg.mxu0
    %665 = vmax.xlane.f32.xlu0 %v662
    %v666 = vpop.xlane.xlu0 %665
    %v667 = vsub.f32 %v662, %v666
    %v668 = vmul.f32 %v667, 1.442695
    %v669 = vpow.pop %v668
    %670 = vadd.xlane.f32.xlu0 %v669
    %v671 = vpop.xlane.xlu0 %670
    %v672 = vlog2.pop %v671
    %v673 = vmul.f32 %v672, 0.6931472
    %v674 = vsub.f32 %v667, %v673
    %v676 = vperm.slane %v213, 0
    %v694 = vunpack.c.l.b16 %v197
    %v695 = vunpack.c.l.b16 %v198
    %v696 = vunpack.c.l.b16 %v199
    %v697 = vunpack.c.l.b16 %v200
    %v698 = vunpack.c.l.b16 %v201
    %v699 = vunpack.c.l.b16 %v202
    %v700 = vunpack.c.l.b16 %v203
    %v701 = vunpack.c.l.b16 %v204
    %v702 = vunpack.c.l.b16 %v205
    %v703 = vunpack.c.l.b16 %v206
    %v704 = vunpack.c.l.b16 %v207
    %v705 = vunpack.c.l.b16 %v208
    %v706 = vunpack.c.l.b16 %v209
    %v707 = vunpack.c.l.b16 %v210
    %v708 = vunpack.c.l.b16 %v211
    %v709 = vunpack.c.l.b16 %v212
    %v710 = vpack.c.b16 %v695, %v694
    %v711 = vpack.c.b16 %v697, %v696
    %v712 = vpack.c.b16 %v699, %v698
    %v713 = vpack.c.b16 %v701, %v700
    %v714 = vpack.c.b16 %v703, %v702
    %v715 = vpack.c.b16 %v705, %v704
    %v716 = vpack.c.b16 %v707, %v706
    %v717 = vpack.c.b16 %v709, %v708
    %726 = vmatpush.bf16.msra.mxu0 %v717
    %727 = vmatpush.bf16.msra.mxu0 %v716
    %728 = vmatpush.bf16.msra.mxu0 %v715
    %729 = vmatpush.bf16.msra.mxu0 %v714
    %730 = vmatpush.bf16.msra.mxu0 %v713
    %731 = vmatpush.bf16.msra.mxu0 %v712
    %732 = vmatpush.bf16.msra.mxu0 %v711
    %733 = vmatpush.bf16.msra.mxu0 %v710
    %734 = vmatmul.bf16.gmra.mxu0 %v318
    %v735 = vpop.f32.mrf.mxu0
    %v736 = vadd.f32 %v676, %v735
    %v737 = vpop.f32.mrf.mxu0
    %738 = vdwg.mxu0
    %v739 = vtanh.pop %v736
    %v740 = vpack.c.bf16 %v739, %v739
    %v742 = vperm.slane %v230, 0
    %v760 = vunpack.c.l.b16 %v214
    %v761 = vunpack.c.l.b16 %v215
    %v762 = vunpack.c.l.b16 %v216
    %v763 = vunpack.c.l.b16 %v217
    %v764 = vunpack.c.l.b16 %v218
    %v765 = vunpack.c.l.b16 %v219
    %v766 = vunpack.c.l.b16 %v220
    %v767 = vunpack.c.l.b16 %v221
    %v768 = vunpack.c.l.b16 %v222
    %v769 = vunpack.c.l.b16 %v223
    %v770 = vunpack.c.l.b16 %v224
    %v771 = vunpack.c.l.b16 %v225
    %v772 = vunpack.c.l.b16 %v226
    %v773 = vunpack.c.l.b16 %v227
    %v774 = vunpack.c.l.b16 %v228
    %v775 = vunpack.c.l.b16 %v229
    %v776 = vpack.c.b16 %v761, %v760
    %v777 = vpack.c.b16 %v763, %v762
    %v778 = vpack.c.b16 %v765, %v764
    %v779 = vpack.c.b16 %v767, %v766
    %v780 = vpack.c.b16 %v769, %v768
    %v781 = vpack.c.b16 %v771, %v770
    %v782 = vpack.c.b16 %v773, %v772
    %v783 = vpack.c.b16 %v775, %v774
    %792 = vmatpush.bf16.msra.mxu0 %v783
    %793 = vmatpush.bf16.msra.mxu0 %v782
    %794 = vmatpush.bf16.msra.mxu0 %v781
    %795 = vmatpush.bf16.msra.mxu0 %v780
    %796 = vmatpush.bf16.msra.mxu0 %v779
    %797 = vmatpush.bf16.msra.mxu0 %v778
    %798 = vmatpush.bf16.msra.mxu0 %v777
    %799 = vmatpush.bf16.msra.mxu0 %v776
    %800 = vmatmul.bf16.gmra.mxu0 %v740
    %v801 = vpop.f32.mrf.mxu0
    %v802 = vadd.f32 %v742, %v801
    %v803 = vpop.f32.mrf.mxu0
    %804 = vdwg.mxu0
    %805 = vadd.xlane.f32.xlu0 %v802
    %v806 = vpop.xlane.xlu0 %805
    %v807 = vlaneseq
    %v808 = vand.u32 %v807, 127
    %vm809 = vcmp.lt.s32.totalorder %v808, 8
    %v810 = vld [vmem:[%s1] sm:$0xff]
    %811 = vset.pattern.permute.xlu0 0
    %812 = vperm.xlu0 %811, %v810
    %v813 = vpop.permute.xlu0 %812
    %vm814 = vcmp.eq.s32.totalorder %v808, %v813
    %vm815 = vmand %vm814, %vm809
    %v816 = vsel %vm815, %v674, 0.0
    %817 = vadd.xlane.f32.xlu0 %v816
    %v818 = vpop.xlane.xlu0 %817
    %v819 = vmul.f32 %v674, 1.442695
    %v820 = vpow.pop %v819
    %v821 = vmul.f32 %v820, %v674
    %v822 = vsel %vm809, %v821, 0.0
    %823 = vadd.xlane.f32.xlu0 %v822
    %v824 = vpop.xlane.xlu0 %823
    %v825 = vsub.f32 0.0, %v824
    %vm826 = vcmp.eq.s32.totalorder %v808, 0
    %vm827 = vcmp.eq.s32.totalorder %v808, 1
    %vm828 = vcmp.eq.s32.totalorder %v808, 2
    %v829 = vsel %vm828, %v825, 0.0
    %v830 = vsel %vm827, %v806, %v829
    %v831 = vsel %vm826, %v818, %v830
    %832 = vst [vmem:[#allocation11] sm:$0xff] %v831
    // Predicated region
    $region70: #{tpu_custom_call.1} parent=1 // pred_check
      _
    $region71: #{tpu_custom_call.1} parent=1 // pred_check_branch
      %834 = sbr.rel (0) target = $region73
    $region72: #{tpu_custom_call.1} parent=1 // pred_region
      %836 = vsyncadd [#allocation4], 0
      %s838 = sshll.u32 [#allocation11], 4
      %s839 = int_to_ptr.vmem [resolvable:$true] %s838
      %s840 = sshll.u32 %s12, 4
      %s841 = int_to_ptr.hbm [resolvable:$true] %s840
      %843 = dma.vmem_to_hbm [thread:$0]  %s839, 128, %s841, [#allocation4]
    $region73: #{tpu_custom_call.1} parent=1 // pred_fallthru
      _
    // Predicated region
    $region74: #{tpu_custom_call.1} parent=1 // pred_check
      _
    $region75: #{tpu_custom_call.1} parent=1 // pred_check_branch
      %845 = sbr.rel (0) target = $region77
    $region76: #{tpu_custom_call.1} parent=1 // pred_region
      %847 = dma.done [#allocation4], 128
    $region77: #{tpu_custom_call.1} parent=1 // pred_fallthru
      _
    %848 = vsyncpa [#allocation3], 1
    %849 = vsyncpa [#allocation6], 1
    %850 = vsyncpa [#allocation9], 1
    %851 = vsyncpa [#allocation4], 1

</llo_original>
